<compile_context>
chip_gen: v7x
topology: tpu7x:2x2x1
jax: 0.10.0
libtpu: 0.0.40
codegen_flags: <defaults>
</compile_context>

<pallas_src>
import functools

import jax
import jax.numpy as jnp
import numpy as np
from jax import lax
from jax.experimental import pallas as pl
from jax.experimental.pallas import tpu as pltpu

_LANE = 128
_VMEM_BUDGET = 40 * (1 << 20)      # live working-set target (v7x VMEM = 64 MiB)
_VMEM_LIMIT = 48 * (1 << 20)       # scoped VMEM limit passed to Mosaic


def _round_up(x, m):
    return (x + m - 1) // m * m


def _choose_batch_tile(B, F):
    """Rows per grid step.

    As large as the VMEM budget allows (amortizes the ~600-cycle per-step
    overhead and produces big DMAs), but keep >= 2 grid blocks when the batch
    allows it (v7x has 2 TensorCores) and keep ~6 live (TB, FP) f32 buffers
    (double-buffered logits block + top-k loop temps) under _VMEM_BUDGET.
    """
    fp = _round_up(F, _LANE)
    b8 = _round_up(max(B, 1), 8)
    vmem_cap = max(8, (_VMEM_BUDGET // (6 * 4 * fp)) // 8 * 8)
    tile = min(64, vmem_cap, b8)
    if b8 > 8:
        tile = min(tile, max(8, (b8 // 2) // 8 * 8))   # >= 2 blocks if possible
    return max(8, tile)


def _postprocess_kernel(ts_ref, logits_ref, ctr_ref, length_ref, cap_ref,
                        fout_ref, iout_ref, x0_sc, x1_sc, capf_sc,
                        *, n_q, n_class):
    """Per grid step: TB batch rows, vectorized along the sublane axis.

    ts_ref     : (TB, 1)       video durations
    logits_ref : (TB, F)       flattened class logits (F = N_q * N_class)
    ctr_ref    : (TB, N_q)     box centers
    length_ref : (TB, N_q)     box lengths
    cap_ref    : (TB, N_q)     caption eval scores
    fout_ref   : (4, TB, KP)   rows: scores, caption_scores, box_start, box_end
    iout_ref   : (TB, KP)      top-k flat indices
    x0_sc/x1_sc/capf_sc : (TB, N_q) f32 VMEM scratch (hoisted per-query values)
    """
    tb, f = logits_ref.shape
    kp = iout_ref.shape[1]

    # Probabilities over the flattened (query, class) axis.  Sigmoid kept here
    # (single EUP pass) so tie-break order matches sigmoid-then-top_k exactly.
    prob = jax.nn.sigmoid(logits_ref[...].astype(jnp.float32))        # (TB, F)
    col_k = lax.broadcasted_iota(jnp.int32, (tb, kp), 1)
    neg_inf = jnp.float32(-jnp.inf)
    big_idx = jnp.int32(f)

    # Iterative top-k (k = n_q) across all TB rows at once.  The mask update
    # of the previous step is fused into this step's scan, and flat indices
    # are regenerated with iota (no materialized int32 array re-read), cutting
    # the per-iteration vector loads on the (TB, F) working set.
    def topk_body(k, carry):
        masked, prev_fi, scores, tki = carry
        fidx = lax.broadcasted_iota(jnp.int32, (tb, f), 1)
        masked = jnp.where(fidx == prev_fi, neg_inf, masked)           # fused
        mx = jnp.max(masked, axis=-1, keepdims=True)                   # (TB, 1)
        fi = jnp.min(jnp.where(masked == mx, fidx, big_idx),
                     axis=-1, keepdims=True)                           # (TB, 1)
        sel = col_k == k
        scores = jnp.where(sel, mx, scores)
        tki = jnp.where(sel, fi, tki)
        return masked, fi, scores, tki

    topk_unroll = n_q if n_q <= 16 else 4
    _, _, scores, tki = lax.fori_loop(
        0, n_q, topk_body,
        (prob,
         jnp.full((tb, 1), -1, jnp.int32),          # nothing masked at step 0
         jnp.zeros((tb, kp), jnp.float32),
         jnp.zeros((tb, kp), jnp.int32)),
        unroll=topk_unroll)

    # Hoisted per-query values: box_cl_to_xy + clamp and f32 casts done once,
    # written to small VMEM scratch so the gather loop only slices column q.
    ctr = ctr_ref[...].astype(jnp.float32)
    ln = length_ref[...].astype(jnp.float32)
    x0_sc[...] = jnp.clip(ctr - 0.5 * ln, 0.0, 1.0)
    x1_sc[...] = jnp.clip(ctr + 0.5 * ln, 0.0, 1.0)
    capf_sc[...] = cap_ref[...].astype(jnp.float32)

    # Box / caption gathers: source query of flat index j is j // n_class;
    # use range tests (no vector int div).  Pure VPU selects -> exact.
    def gather_body(q, carry):
        gx0, gx1, gcap = carry
        lo = q * n_class
        sel_q = jnp.logical_and(tki >= lo, tki < lo + n_class)         # (TB, KP)
        x0_q = x0_sc[:, pl.ds(q, 1)]                                   # (TB, 1)
        x1_q = x1_sc[:, pl.ds(q, 1)]
        cap_q = capf_sc[:, pl.ds(q, 1)]
        return (jnp.where(sel_q, x0_q, gx0),
                jnp.where(sel_q, x1_q, gx1),
                jnp.where(sel_q, cap_q, gcap))

    zeros = jnp.zeros((tb, kp), jnp.float32)
    gather_unroll = n_q if n_q <= 16 else 8
    gx0, gx1, gcap = lax.fori_loop(0, n_q, gather_body,
                                   (zeros, zeros, zeros),
                                   unroll=gather_unroll)

    ts = ts_ref[...].astype(jnp.float32)                               # (TB, 1)
    fout_ref[0] = scores
    fout_ref[1] = gcap
    fout_ref[2] = gx0 * ts      # scale by video duration
    fout_ref[3] = gx1 * ts
    iout_ref[...] = tki


def post_process(pred_logits, pred_boxes, pred_count, cap_prob_eval_score,
                 target_sizes):
    B, N_q, N_class = pred_logits.shape
    F = N_q * N_class
    KP = _round_up(N_q, _LANE)
    TB = _choose_batch_tile(B, F)
    nblk = pl.cdiv(B, TB)
    B_out = nblk * TB           # output rows padded to a whole number of blocks

    # No pad / no copy of the large logits tensor: contiguous reshape only.
    logits_flat = pred_logits.reshape(B, F)
    ctr = pred_boxes[:, :, 0]
    length = pred_boxes[:, :, 1]
    ts = target_sizes.reshape(B, 1)

    kernel = functools.partial(_postprocess_kernel, n_q=N_q, n_class=N_class)

    fout, iout = pl.pallas_call(
        kernel,
        grid=(nblk,),
        in_specs=[
            pl.BlockSpec((TB, 1), lambda i: (i, 0)),          # durations
            pl.BlockSpec((TB, F), lambda i: (i, 0)),          # flat logits (full F)
            pl.BlockSpec((TB, N_q), lambda i: (i, 0)),        # box centers
            pl.BlockSpec((TB, N_q), lambda i: (i, 0)),        # box lengths
            pl.BlockSpec((TB, N_q), lambda i: (i, 0)),        # caption scores
        ],
        out_specs=(
            pl.BlockSpec((4, TB, KP), lambda i: (0, i, 0)),   # packed floats
            pl.BlockSpec((TB, KP), lambda i: (i, 0)),         # top-k indices
        ),
        out_shape=(
            jax.ShapeDtypeStruct((4, B_out, KP), jnp.float32),
            jax.ShapeDtypeStruct((B_out, KP), jnp.int32),
        ),
        scratch_shapes=[
            pltpu.VMEM((TB, N_q), jnp.float32),               # x0
            pltpu.VMEM((TB, N_q), jnp.float32),               # x1
            pltpu.VMEM((TB, N_q), jnp.float32),               # cap (f32)
        ],
        compiler_params=pltpu.CompilerParams(
            dimension_semantics=("parallel",),
            vmem_limit_bytes=_VMEM_LIMIT),
    )(ts, logits_flat, ctr, length, cap_prob_eval_score)

    scores = fout[0, :B, :N_q]
    cap_scores = fout[1, :B, :N_q]
    boxes = jnp.stack([fout[2, :B, :N_q], fout[3, :B, :N_q]], axis=-1)
    tki = iout[:B, :N_q]
    tkb = tki // N_class              # cheap scalar-ish math, done in wrapper
    labels = tki % N_class
    eseq = jnp.clip(jnp.argmax(pred_count, axis=-1), 1, None).astype(jnp.int32)

    # TODO(synk): tokenizer decode of `seq` into caption strings, the Hungarian
    # grounding matcher, and the text-encoder contrastive cl_scores path are
    # string / external-model ops with no Pallas equivalent; cl_scores matches
    # the enable_contrastive=False branch (zeros).
    return {
        "scores": scores,
        "labels": labels,
        "topk_boxes": tkb,
        "topk_indexes": tki,
        "boxes": boxes,
        "caption_scores": cap_scores,
        "cl_scores": jnp.zeros((B, N_q), jnp.float32),
        "pred_seq_len": eseq,
        "vid_duration": target_sizes,
    }


def _check(B, N_q, N_class, L, seed):
    key = jax.random.PRNGKey(seed)
    k1, k2, k3, k4, k5 = jax.random.split(key, 5)
    # Quantize logits to a coarse grid: sigmoid gaps stay >> 1 ulp, so the
    # kernel's and XLA's sigmoid cannot disagree on the top-k ordering.
    raw = jax.random.normal(k1, (B, N_q, N_class), jnp.float32)
    pred_logits = jnp.round(raw * 100.0) / 100.0
    pred_boxes = jax.random.uniform(k2, (B, N_q, 2), jnp.float32)          # (center, length)
    pred_count = jax.random.normal(k3, (B, L), jnp.float32)
    cap_prob_eval_score = jax.random.normal(k4, (B, N_q), jnp.float32)
    target_sizes = jax.random.uniform(k5, (B,), jnp.float32, 20.0, 120.0)  # durations

    res = post_process(pred_logits, pred_boxes, pred_count,
                       cap_prob_eval_score, target_sizes)
    res = jax.tree_util.tree_map(jax.block_until_ready, res)

    # Pure-JAX reference of the forward() tensor math.
    prob = jax.nn.sigmoid(pred_logits)
    tv, ti = jax.lax.top_k(prob.reshape(B, -1), N_q)
    tb = ti // N_class
    lb = ti % N_class
    c = pred_boxes[..., 0]
    ln = pred_boxes[..., 1]
    xy = jnp.clip(jnp.stack([c - 0.5 * ln, c + 0.5 * ln], axis=-1), 0.0, 1.0)
    g = jnp.take_along_axis(xy, jnp.repeat(tb[..., None], 2, axis=-1), axis=1)
    g = g * target_sizes[:, None, None]
    cap_ref = jnp.take_along_axis(cap_prob_eval_score, tb, axis=1)
    eseq_ref = jnp.clip(jnp.argmax(pred_count, axis=-1), 1, None)

    assert np.allclose(np.asarray(res["scores"]), np.asarray(tv), atol=1e-5)
    assert np.array_equal(np.asarray(res["topk_indexes"]), np.asarray(ti))
    assert np.array_equal(np.asarray(res["topk_boxes"]), np.asarray(tb))
    assert np.array_equal(np.asarray(res["labels"]), np.asarray(lb))
    assert np.allclose(np.asarray(res["boxes"]), np.asarray(g), atol=1e-4)
    assert np.allclose(np.asarray(res["caption_scores"]), np.asarray(cap_ref),
                       atol=1e-5)
    assert np.array_equal(np.asarray(res["pred_seq_len"]), np.asarray(eseq_ref))


if __name__ == "__main__":
    _check(B=2, N_q=8, N_class=4, L=11, seed=0)    # single (partial) block
    _check(B=19, N_q=10, N_class=7, L=6, seed=1)   # multi-block + tail block
    print("KERNEL_OK")
</pallas_src>

<mosaic_0001>
module attributes {stable_mosaic.version = 11 : i64} {
  func.func @_postprocess_kernel(%arg0: i32, %arg1: memref<8x1xf32, #tpu.memory_space<vmem>>, %arg2: memref<8x32xf32, #tpu.memory_space<vmem>>, %arg3: memref<8x8xf32, #tpu.memory_space<vmem>>, %arg4: memref<8x8xf32, #tpu.memory_space<vmem>>, %arg5: memref<8x8xf32, #tpu.memory_space<vmem>>, %arg6: memref<4x8x128xf32, #tpu.memory_space<vmem>>, %arg7: memref<8x128xi32, #tpu.memory_space<vmem>>, %arg8: memref<8x8xf32, #tpu.memory_space<vmem>>, %arg9: memref<8x8xf32, #tpu.memory_space<vmem>>, %arg10: memref<8x8xf32, #tpu.memory_space<vmem>>) attributes {dimension_semantics = [#tpu.dimension_semantics<parallel>], iteration_bounds = array<i64: 1>, scalar_prefetch = 0 : i64, scratch_operands = 3 : i64, tpu.core_type = #tpu.core_type<tc>, window_params = [{transform_indices = @transform_0, window_bounds = array<i64: 8, 1>}, {transform_indices = @transform_1, window_bounds = array<i64: 8, 32>}, {transform_indices = @transform_2, window_bounds = array<i64: 8, 8>}, {transform_indices = @transform_3, window_bounds = array<i64: 8, 8>}, {transform_indices = @transform_4, window_bounds = array<i64: 8, 8>}, {transform_indices = @transform_5, window_bounds = array<i64: 4, 8, 128>}, {transform_indices = @transform_6, window_bounds = array<i64: 8, 128>}]} {
    %c0 = arith.constant 0 : index
    %c0_0 = arith.constant 0 : index
    %0 = vector.load %arg2[%c0, %c0_0] : memref<8x32xf32, #tpu.memory_space<vmem>>, vector<8x32xf32>
    %1 = arith.negf %0 : vector<8x32xf32>
    %2 = math.exp %1 : vector<8x32xf32>
    %cst = arith.constant 1.000000e+00 : f32
    %3 = vector.broadcast %cst : f32 to vector<8x32xf32>
    %4 = arith.addf %3, %2 : vector<8x32xf32>
    %5 = arith.divf %3, %4 : vector<8x32xf32>
    %6 = tpu.iota {dimensions = array<i32: 1>} : vector<8x128xi32>
    %c-1_i32 = arith.constant -1 : i32
    %7 = vector.broadcast %c-1_i32 : i32 to vector<8x1xi32>
    %cst_1 = arith.constant 0.000000e+00 : f32
    %8 = vector.broadcast %cst_1 : f32 to vector<8x128xf32>
    %c0_i32 = arith.constant 0 : i32
    %9 = vector.broadcast %c0_i32 : i32 to vector<8x128xi32>
    %cst_2 = arith.constant 0xFF800000 : f32
    %c32_i32 = arith.constant 32 : i32
    %c0_i32_3 = arith.constant 0 : i32
    %10 = tpu.iota {dimensions = array<i32: 1>} : vector<8x32xi32>
    %11 = vector.broadcast %7 : vector<8x1xi32> to vector<8x32xi32>
    %12 = arith.cmpi eq, %10, %11 : vector<8x32xi32>
    %13 = vector.broadcast %cst_2 : f32 to vector<8x32xf32>
    %14 = arith.select %12, %13, %5 : vector<8x32xi1>, vector<8x32xf32>
    %cst_4 = arith.constant dense<0xFF800000> : vector<8xf32>
    %15 = vector.multi_reduction <maximumf>, %14, %cst_4 [1] : vector<8x32xf32> to vector<8xf32>
    %16 = vector.shape_cast %15 : vector<8xf32> to vector<8x1xf32>
    %17 = vector.broadcast %16 : vector<8x1xf32> to vector<8x32xf32>
    %18 = arith.cmpf oeq, %14, %17 : vector<8x32xf32>
    %19 = vector.broadcast %c32_i32 : i32 to vector<8x32xi32>
    %20 = arith.select %18, %10, %19 : vector<8x32xi1>, vector<8x32xi32>
    %cst_5 = arith.constant dense<2147483647> : vector<8xi32>
    %21 = vector.multi_reduction <minsi>, %20, %cst_5 [1] : vector<8x32xi32> to vector<8xi32>
    %22 = vector.shape_cast %21 : vector<8xi32> to vector<8x1xi32>
    %23 = vector.broadcast %c0_i32_3 : i32 to vector<8x128xi32>
    %24 = arith.cmpi eq, %6, %23 : vector<8x128xi32>
    %25 = vector.shape_cast %16 : vector<8x1xf32> to vector<8x1xf32>
    %26 = vector.broadcast %25 : vector<8x1xf32> to vector<8x128xf32>
    %27 = arith.select %24, %26, %8 : vector<8x128xi1>, vector<8x128xf32>
    %28 = vector.shape_cast %22 : vector<8x1xi32> to vector<8x1xi32>
    %29 = vector.broadcast %28 : vector<8x1xi32> to vector<8x128xi32>
    %30 = arith.select %24, %29, %9 : vector<8x128xi1>, vector<8x128xi32>
    %c1_i32 = arith.constant 1 : i32
    %31 = tpu.iota {dimensions = array<i32: 1>} : vector<8x32xi32>
    %32 = vector.broadcast %22 : vector<8x1xi32> to vector<8x32xi32>
    %33 = arith.cmpi eq, %31, %32 : vector<8x32xi32>
    %34 = vector.broadcast %cst_2 : f32 to vector<8x32xf32>
    %35 = arith.select %33, %34, %14 : vector<8x32xi1>, vector<8x32xf32>
    %cst_6 = arith.constant dense<0xFF800000> : vector<8xf32>
    %36 = vector.multi_reduction <maximumf>, %35, %cst_6 [1] : vector<8x32xf32> to vector<8xf32>
    %37 = vector.shape_cast %36 : vector<8xf32> to vector<8x1xf32>
    %38 = vector.broadcast %37 : vector<8x1xf32> to vector<8x32xf32>
    %39 = arith.cmpf oeq, %35, %38 : vector<8x32xf32>
    %40 = vector.broadcast %c32_i32 : i32 to vector<8x32xi32>
    %41 = arith.select %39, %31, %40 : vector<8x32xi1>, vector<8x32xi32>
    %cst_7 = arith.constant dense<2147483647> : vector<8xi32>
    %42 = vector.multi_reduction <minsi>, %41, %cst_7 [1] : vector<8x32xi32> to vector<8xi32>
    %43 = vector.shape_cast %42 : vector<8xi32> to vector<8x1xi32>
    %44 = vector.broadcast %c1_i32 : i32 to vector<8x128xi32>
    %45 = arith.cmpi eq, %6, %44 : vector<8x128xi32>
    %46 = vector.shape_cast %37 : vector<8x1xf32> to vector<8x1xf32>
    %47 = vector.broadcast %46 : vector<8x1xf32> to vector<8x128xf32>
    %48 = arith.select %45, %47, %27 : vector<8x128xi1>, vector<8x128xf32>
    %49 = vector.shape_cast %43 : vector<8x1xi32> to vector<8x1xi32>
    %50 = vector.broadcast %49 : vector<8x1xi32> to vector<8x128xi32>
    %51 = arith.select %45, %50, %30 : vector<8x128xi1>, vector<8x128xi32>
    %c2_i32 = arith.constant 2 : i32
    %52 = tpu.iota {dimensions = array<i32: 1>} : vector<8x32xi32>
    %53 = vector.broadcast %43 : vector<8x1xi32> to vector<8x32xi32>
    %54 = arith.cmpi eq, %52, %53 : vector<8x32xi32>
    %55 = vector.broadcast %cst_2 : f32 to vector<8x32xf32>
    %56 = arith.select %54, %55, %35 : vector<8x32xi1>, vector<8x32xf32>
    %cst_8 = arith.constant dense<0xFF800000> : vector<8xf32>
    %57 = vector.multi_reduction <maximumf>, %56, %cst_8 [1] : vector<8x32xf32> to vector<8xf32>
    %58 = vector.shape_cast %57 : vector<8xf32> to vector<8x1xf32>
    %59 = vector.broadcast %58 : vector<8x1xf32> to vector<8x32xf32>
    %60 = arith.cmpf oeq, %56, %59 : vector<8x32xf32>
    %61 = vector.broadcast %c32_i32 : i32 to vector<8x32xi32>
    %62 = arith.select %60, %52, %61 : vector<8x32xi1>, vector<8x32xi32>
    %cst_9 = arith.constant dense<2147483647> : vector<8xi32>
    %63 = vector.multi_reduction <minsi>, %62, %cst_9 [1] : vector<8x32xi32> to vector<8xi32>
    %64 = vector.shape_cast %63 : vector<8xi32> to vector<8x1xi32>
    %65 = vector.broadcast %c2_i32 : i32 to vector<8x128xi32>
    %66 = arith.cmpi eq, %6, %65 : vector<8x128xi32>
    %67 = vector.shape_cast %58 : vector<8x1xf32> to vector<8x1xf32>
    %68 = vector.broadcast %67 : vector<8x1xf32> to vector<8x128xf32>
    %69 = arith.select %66, %68, %48 : vector<8x128xi1>, vector<8x128xf32>
    %70 = vector.shape_cast %64 : vector<8x1xi32> to vector<8x1xi32>
    %71 = vector.broadcast %70 : vector<8x1xi32> to vector<8x128xi32>
    %72 = arith.select %66, %71, %51 : vector<8x128xi1>, vector<8x128xi32>
    %c3_i32 = arith.constant 3 : i32
    %73 = tpu.iota {dimensions = array<i32: 1>} : vector<8x32xi32>
    %74 = vector.broadcast %64 : vector<8x1xi32> to vector<8x32xi32>
    %75 = arith.cmpi eq, %73, %74 : vector<8x32xi32>
    %76 = vector.broadcast %cst_2 : f32 to vector<8x32xf32>
    %77 = arith.select %75, %76, %56 : vector<8x32xi1>, vector<8x32xf32>
    %cst_10 = arith.constant dense<0xFF800000> : vector<8xf32>
    %78 = vector.multi_reduction <maximumf>, %77, %cst_10 [1] : vector<8x32xf32> to vector<8xf32>
    %79 = vector.shape_cast %78 : vector<8xf32> to vector<8x1xf32>
    %80 = vector.broadcast %79 : vector<8x1xf32> to vector<8x32xf32>
    %81 = arith.cmpf oeq, %77, %80 : vector<8x32xf32>
    %82 = vector.broadcast %c32_i32 : i32 to vector<8x32xi32>
    %83 = arith.select %81, %73, %82 : vector<8x32xi1>, vector<8x32xi32>
    %cst_11 = arith.constant dense<2147483647> : vector<8xi32>
    %84 = vector.multi_reduction <minsi>, %83, %cst_11 [1] : vector<8x32xi32> to vector<8xi32>
    %85 = vector.shape_cast %84 : vector<8xi32> to vector<8x1xi32>
    %86 = vector.broadcast %c3_i32 : i32 to vector<8x128xi32>
    %87 = arith.cmpi eq, %6, %86 : vector<8x128xi32>
    %88 = vector.shape_cast %79 : vector<8x1xf32> to vector<8x1xf32>
    %89 = vector.broadcast %88 : vector<8x1xf32> to vector<8x128xf32>
    %90 = arith.select %87, %89, %69 : vector<8x128xi1>, vector<8x128xf32>
    %91 = vector.shape_cast %85 : vector<8x1xi32> to vector<8x1xi32>
    %92 = vector.broadcast %91 : vector<8x1xi32> to vector<8x128xi32>
    %93 = arith.select %87, %92, %72 : vector<8x128xi1>, vector<8x128xi32>
    %c4_i32 = arith.constant 4 : i32
    %94 = tpu.iota {dimensions = array<i32: 1>} : vector<8x32xi32>
    %95 = vector.broadcast %85 : vector<8x1xi32> to vector<8x32xi32>
    %96 = arith.cmpi eq, %94, %95 : vector<8x32xi32>
    %97 = vector.broadcast %cst_2 : f32 to vector<8x32xf32>
    %98 = arith.select %96, %97, %77 : vector<8x32xi1>, vector<8x32xf32>
    %cst_12 = arith.constant dense<0xFF800000> : vector<8xf32>
    %99 = vector.multi_reduction <maximumf>, %98, %cst_12 [1] : vector<8x32xf32> to vector<8xf32>
    %100 = vector.shape_cast %99 : vector<8xf32> to vector<8x1xf32>
    %101 = vector.broadcast %100 : vector<8x1xf32> to vector<8x32xf32>
    %102 = arith.cmpf oeq, %98, %101 : vector<8x32xf32>
    %103 = vector.broadcast %c32_i32 : i32 to vector<8x32xi32>
    %104 = arith.select %102, %94, %103 : vector<8x32xi1>, vector<8x32xi32>
    %cst_13 = arith.constant dense<2147483647> : vector<8xi32>
    %105 = vector.multi_reduction <minsi>, %104, %cst_13 [1] : vector<8x32xi32> to vector<8xi32>
    %106 = vector.shape_cast %105 : vector<8xi32> to vector<8x1xi32>
    %107 = vector.broadcast %c4_i32 : i32 to vector<8x128xi32>
    %108 = arith.cmpi eq, %6, %107 : vector<8x128xi32>
    %109 = vector.shape_cast %100 : vector<8x1xf32> to vector<8x1xf32>
    %110 = vector.broadcast %109 : vector<8x1xf32> to vector<8x128xf32>
    %111 = arith.select %108, %110, %90 : vector<8x128xi1>, vector<8x128xf32>
    %112 = vector.shape_cast %106 : vector<8x1xi32> to vector<8x1xi32>
    %113 = vector.broadcast %112 : vector<8x1xi32> to vector<8x128xi32>
    %114 = arith.select %108, %113, %93 : vector<8x128xi1>, vector<8x128xi32>
    %c5_i32 = arith.constant 5 : i32
    %115 = tpu.iota {dimensions = array<i32: 1>} : vector<8x32xi32>
    %116 = vector.broadcast %106 : vector<8x1xi32> to vector<8x32xi32>
    %117 = arith.cmpi eq, %115, %116 : vector<8x32xi32>
    %118 = vector.broadcast %cst_2 : f32 to vector<8x32xf32>
    %119 = arith.select %117, %118, %98 : vector<8x32xi1>, vector<8x32xf32>
    %cst_14 = arith.constant dense<0xFF800000> : vector<8xf32>
    %120 = vector.multi_reduction <maximumf>, %119, %cst_14 [1] : vector<8x32xf32> to vector<8xf32>
    %121 = vector.shape_cast %120 : vector<8xf32> to vector<8x1xf32>
    %122 = vector.broadcast %121 : vector<8x1xf32> to vector<8x32xf32>
    %123 = arith.cmpf oeq, %119, %122 : vector<8x32xf32>
    %124 = vector.broadcast %c32_i32 : i32 to vector<8x32xi32>
    %125 = arith.select %123, %115, %124 : vector<8x32xi1>, vector<8x32xi32>
    %cst_15 = arith.constant dense<2147483647> : vector<8xi32>
    %126 = vector.multi_reduction <minsi>, %125, %cst_15 [1] : vector<8x32xi32> to vector<8xi32>
    %127 = vector.shape_cast %126 : vector<8xi32> to vector<8x1xi32>
    %128 = vector.broadcast %c5_i32 : i32 to vector<8x128xi32>
    %129 = arith.cmpi eq, %6, %128 : vector<8x128xi32>
    %130 = vector.shape_cast %121 : vector<8x1xf32> to vector<8x1xf32>
    %131 = vector.broadcast %130 : vector<8x1xf32> to vector<8x128xf32>
    %132 = arith.select %129, %131, %111 : vector<8x128xi1>, vector<8x128xf32>
    %133 = vector.shape_cast %127 : vector<8x1xi32> to vector<8x1xi32>
    %134 = vector.broadcast %133 : vector<8x1xi32> to vector<8x128xi32>
    %135 = arith.select %129, %134, %114 : vector<8x128xi1>, vector<8x128xi32>
    %c6_i32 = arith.constant 6 : i32
    %136 = tpu.iota {dimensions = array<i32: 1>} : vector<8x32xi32>
    %137 = vector.broadcast %127 : vector<8x1xi32> to vector<8x32xi32>
    %138 = arith.cmpi eq, %136, %137 : vector<8x32xi32>
    %139 = vector.broadcast %cst_2 : f32 to vector<8x32xf32>
    %140 = arith.select %138, %139, %119 : vector<8x32xi1>, vector<8x32xf32>
    %cst_16 = arith.constant dense<0xFF800000> : vector<8xf32>
    %141 = vector.multi_reduction <maximumf>, %140, %cst_16 [1] : vector<8x32xf32> to vector<8xf32>
    %142 = vector.shape_cast %141 : vector<8xf32> to vector<8x1xf32>
    %143 = vector.broadcast %142 : vector<8x1xf32> to vector<8x32xf32>
    %144 = arith.cmpf oeq, %140, %143 : vector<8x32xf32>
    %145 = vector.broadcast %c32_i32 : i32 to vector<8x32xi32>
    %146 = arith.select %144, %136, %145 : vector<8x32xi1>, vector<8x32xi32>
    %cst_17 = arith.constant dense<2147483647> : vector<8xi32>
    %147 = vector.multi_reduction <minsi>, %146, %cst_17 [1] : vector<8x32xi32> to vector<8xi32>
    %148 = vector.shape_cast %147 : vector<8xi32> to vector<8x1xi32>
    %149 = vector.broadcast %c6_i32 : i32 to vector<8x128xi32>
    %150 = arith.cmpi eq, %6, %149 : vector<8x128xi32>
    %151 = vector.shape_cast %142 : vector<8x1xf32> to vector<8x1xf32>
    %152 = vector.broadcast %151 : vector<8x1xf32> to vector<8x128xf32>
    %153 = arith.select %150, %152, %132 : vector<8x128xi1>, vector<8x128xf32>
    %154 = vector.shape_cast %148 : vector<8x1xi32> to vector<8x1xi32>
    %155 = vector.broadcast %154 : vector<8x1xi32> to vector<8x128xi32>
    %156 = arith.select %150, %155, %135 : vector<8x128xi1>, vector<8x128xi32>
    %c7_i32 = arith.constant 7 : i32
    %157 = tpu.iota {dimensions = array<i32: 1>} : vector<8x32xi32>
    %158 = vector.broadcast %148 : vector<8x1xi32> to vector<8x32xi32>
    %159 = arith.cmpi eq, %157, %158 : vector<8x32xi32>
    %160 = vector.broadcast %cst_2 : f32 to vector<8x32xf32>
    %161 = arith.select %159, %160, %140 : vector<8x32xi1>, vector<8x32xf32>
    %cst_18 = arith.constant dense<0xFF800000> : vector<8xf32>
    %162 = vector.multi_reduction <maximumf>, %161, %cst_18 [1] : vector<8x32xf32> to vector<8xf32>
    %163 = vector.shape_cast %162 : vector<8xf32> to vector<8x1xf32>
    %164 = vector.broadcast %163 : vector<8x1xf32> to vector<8x32xf32>
    %165 = arith.cmpf oeq, %161, %164 : vector<8x32xf32>
    %166 = vector.broadcast %c32_i32 : i32 to vector<8x32xi32>
    %167 = arith.select %165, %157, %166 : vector<8x32xi1>, vector<8x32xi32>
    %cst_19 = arith.constant dense<2147483647> : vector<8xi32>
    %168 = vector.multi_reduction <minsi>, %167, %cst_19 [1] : vector<8x32xi32> to vector<8xi32>
    %169 = vector.shape_cast %168 : vector<8xi32> to vector<8x1xi32>
    %170 = vector.broadcast %c7_i32 : i32 to vector<8x128xi32>
    %171 = arith.cmpi eq, %6, %170 : vector<8x128xi32>
    %172 = vector.shape_cast %163 : vector<8x1xf32> to vector<8x1xf32>
    %173 = vector.broadcast %172 : vector<8x1xf32> to vector<8x128xf32>
    %174 = arith.select %171, %173, %153 : vector<8x128xi1>, vector<8x128xf32>
    %175 = vector.shape_cast %169 : vector<8x1xi32> to vector<8x1xi32>
    %176 = vector.broadcast %175 : vector<8x1xi32> to vector<8x128xi32>
    %177 = arith.select %171, %176, %156 : vector<8x128xi1>, vector<8x128xi32>
    %c8_i32 = arith.constant 8 : i32
    %c0_20 = arith.constant 0 : index
    %c0_21 = arith.constant 0 : index
    %178 = vector.load %arg3[%c0_20, %c0_21] : memref<8x8xf32, #tpu.memory_space<vmem>>, vector<8x8xf32>
    %c0_22 = arith.constant 0 : index
    %c0_23 = arith.constant 0 : index
    %179 = vector.load %arg4[%c0_22, %c0_23] : memref<8x8xf32, #tpu.memory_space<vmem>>, vector<8x8xf32>
    %cst_24 = arith.constant 5.000000e-01 : f32
    %180 = vector.broadcast %cst_24 : f32 to vector<8x8xf32>
    %181 = arith.mulf %180, %179 : vector<8x8xf32>
    %182 = arith.subf %178, %181 : vector<8x8xf32>
    %cst_25 = arith.constant 0.000000e+00 : f32
    %cst_26 = arith.constant 1.000000e+00 : f32
    %183 = vector.broadcast %cst_25 : f32 to vector<8x8xf32>
    %184 = arith.maximumf %183, %182 : vector<8x8xf32>
    %185 = vector.broadcast %cst_26 : f32 to vector<8x8xf32>
    %186 = arith.minimumf %185, %184 : vector<8x8xf32>
    %c0_27 = arith.constant 0 : index
    %c0_28 = arith.constant 0 : index
    %187 = vector.load %arg8[%c0_27, %c0_28] : memref<8x8xf32, #tpu.memory_space<vmem>>, vector<8x8xf32>
    tpu.vector_store %arg8[%c0_27, %c0_28], %186 {strides = array<i32>} : memref<8x8xf32, #tpu.memory_space<vmem>>, vector<8x8xf32>,
    %cst_29 = arith.constant 5.000000e-01 : f32
    %188 = vector.broadcast %cst_29 : f32 to vector<8x8xf32>
    %189 = arith.mulf %188, %179 : vector<8x8xf32>
    %190 = arith.addf %178, %189 : vector<8x8xf32>
    %cst_30 = arith.constant 0.000000e+00 : f32
    %cst_31 = arith.constant 1.000000e+00 : f32
    %191 = vector.broadcast %cst_30 : f32 to vector<8x8xf32>
    %192 = arith.maximumf %191, %190 : vector<8x8xf32>
    %193 = vector.broadcast %cst_31 : f32 to vector<8x8xf32>
    %194 = arith.minimumf %193, %192 : vector<8x8xf32>
    %c0_32 = arith.constant 0 : index
    %c0_33 = arith.constant 0 : index
    %195 = vector.load %arg9[%c0_32, %c0_33] : memref<8x8xf32, #tpu.memory_space<vmem>>, vector<8x8xf32>
    tpu.vector_store %arg9[%c0_32, %c0_33], %194 {strides = array<i32>} : memref<8x8xf32, #tpu.memory_space<vmem>>, vector<8x8xf32>,
    %c0_34 = arith.constant 0 : index
    %c0_35 = arith.constant 0 : index
    %196 = vector.load %arg5[%c0_34, %c0_35] : memref<8x8xf32, #tpu.memory_space<vmem>>, vector<8x8xf32>
    %c0_36 = arith.constant 0 : index
    %c0_37 = arith.constant 0 : index
    %197 = vector.load %arg10[%c0_36, %c0_37] : memref<8x8xf32, #tpu.memory_space<vmem>>, vector<8x8xf32>
    tpu.vector_store %arg10[%c0_36, %c0_37], %196 {strides = array<i32>} : memref<8x8xf32, #tpu.memory_space<vmem>>, vector<8x8xf32>,
    %cst_38 = arith.constant 0.000000e+00 : f32
    %198 = vector.broadcast %cst_38 : f32 to vector<8x128xf32>
    %c0_i32_39 = arith.constant 0 : i32
    %c4_i32_40 = arith.constant 4 : i32
    %199 = arith.muli %c0_i32_39, %c4_i32_40 : i32
    %200 = vector.broadcast %199 : i32 to vector<8x128xi32>
    %201 = arith.cmpi sge, %177, %200 : vector<8x128xi32>
    %c4_i32_41 = arith.constant 4 : i32
    %202 = arith.addi %199, %c4_i32_41 : i32
    %203 = vector.broadcast %202 : i32 to vector<8x128xi32>
    %204 = arith.cmpi slt, %177, %203 : vector<8x128xi32>
    %205 = arith.andi %201, %204 : vector<8x128xi1>
    %c0_42 = arith.constant 0 : index
    %206 = arith.index_cast %c0_i32_39 : i32 to index
    %207 = vector.load %arg8[%c0_42, %206] : memref<8x8xf32, #tpu.memory_space<vmem>>, vector<8x1xf32>
    %c0_43 = arith.constant 0 : index
    %208 = arith.index_cast %c0_i32_39 : i32 to index
    %209 = vector.load %arg9[%c0_43, %208] : memref<8x8xf32, #tpu.memory_space<vmem>>, vector<8x1xf32>
    %c0_44 = arith.constant 0 : index
    %210 = arith.index_cast %c0_i32_39 : i32 to index
    %211 = vector.load %arg10[%c0_44, %210] : memref<8x8xf32, #tpu.memory_space<vmem>>, vector<8x1xf32>
    %212 = vector.shape_cast %207 : vector<8x1xf32> to vector<8x1xf32>
    %213 = vector.broadcast %212 : vector<8x1xf32> to vector<8x128xf32>
    %214 = arith.select %205, %213, %198 : vector<8x128xi1>, vector<8x128xf32>
    %215 = vector.shape_cast %209 : vector<8x1xf32> to vector<8x1xf32>
    %216 = vector.broadcast %215 : vector<8x1xf32> to vector<8x128xf32>
    %217 = arith.select %205, %216, %198 : vector<8x128xi1>, vector<8x128xf32>
    %218 = vector.shape_cast %211 : vector<8x1xf32> to vector<8x1xf32>
    %219 = vector.broadcast %218 : vector<8x1xf32> to vector<8x128xf32>
    %220 = arith.select %205, %219, %198 : vector<8x128xi1>, vector<8x128xf32>
    %c1_i32_45 = arith.constant 1 : i32
    %c4_i32_46 = arith.constant 4 : i32
    %221 = arith.muli %c1_i32_45, %c4_i32_46 : i32
    %222 = vector.broadcast %221 : i32 to vector<8x128xi32>
    %223 = arith.cmpi sge, %177, %222 : vector<8x128xi32>
    %c4_i32_47 = arith.constant 4 : i32
    %224 = arith.addi %221, %c4_i32_47 : i32
    %225 = vector.broadcast %224 : i32 to vector<8x128xi32>
    %226 = arith.cmpi slt, %177, %225 : vector<8x128xi32>
    %227 = arith.andi %223, %226 : vector<8x128xi1>
    %c0_48 = arith.constant 0 : index
    %228 = arith.index_cast %c1_i32_45 : i32 to index
    %229 = vector.load %arg8[%c0_48, %228] : memref<8x8xf32, #tpu.memory_space<vmem>>, vector<8x1xf32>
    %c0_49 = arith.constant 0 : index
    %230 = arith.index_cast %c1_i32_45 : i32 to index
    %231 = vector.load %arg9[%c0_49, %230] : memref<8x8xf32, #tpu.memory_space<vmem>>, vector<8x1xf32>
    %c0_50 = arith.constant 0 : index
    %232 = arith.index_cast %c1_i32_45 : i32 to index
    %233 = vector.load %arg10[%c0_50, %232] : memref<8x8xf32, #tpu.memory_space<vmem>>, vector<8x1xf32>
    %234 = vector.shape_cast %229 : vector<8x1xf32> to vector<8x1xf32>
    %235 = vector.broadcast %234 : vector<8x1xf32> to vector<8x128xf32>
    %236 = arith.select %227, %235, %214 : vector<8x128xi1>, vector<8x128xf32>
    %237 = vector.shape_cast %231 : vector<8x1xf32> to vector<8x1xf32>
    %238 = vector.broadcast %237 : vector<8x1xf32> to vector<8x128xf32>
    %239 = arith.select %227, %238, %217 : vector<8x128xi1>, vector<8x128xf32>
    %240 = vector.shape_cast %233 : vector<8x1xf32> to vector<8x1xf32>
    %241 = vector.broadcast %240 : vector<8x1xf32> to vector<8x128xf32>
    %242 = arith.select %227, %241, %220 : vector<8x128xi1>, vector<8x128xf32>
    %c2_i32_51 = arith.constant 2 : i32
    %c4_i32_52 = arith.constant 4 : i32
    %243 = arith.muli %c2_i32_51, %c4_i32_52 : i32
    %244 = vector.broadcast %243 : i32 to vector<8x128xi32>
    %245 = arith.cmpi sge, %177, %244 : vector<8x128xi32>
    %c4_i32_53 = arith.constant 4 : i32
    %246 = arith.addi %243, %c4_i32_53 : i32
    %247 = vector.broadcast %246 : i32 to vector<8x128xi32>
    %248 = arith.cmpi slt, %177, %247 : vector<8x128xi32>
    %249 = arith.andi %245, %248 : vector<8x128xi1>
    %c0_54 = arith.constant 0 : index
    %250 = arith.index_cast %c2_i32_51 : i32 to index
    %251 = vector.load %arg8[%c0_54, %250] : memref<8x8xf32, #tpu.memory_space<vmem>>, vector<8x1xf32>
    %c0_55 = arith.constant 0 : index
    %252 = arith.index_cast %c2_i32_51 : i32 to index
    %253 = vector.load %arg9[%c0_55, %252] : memref<8x8xf32, #tpu.memory_space<vmem>>, vector<8x1xf32>
    %c0_56 = arith.constant 0 : index
    %254 = arith.index_cast %c2_i32_51 : i32 to index
    %255 = vector.load %arg10[%c0_56, %254] : memref<8x8xf32, #tpu.memory_space<vmem>>, vector<8x1xf32>
    %256 = vector.shape_cast %251 : vector<8x1xf32> to vector<8x1xf32>
    %257 = vector.broadcast %256 : vector<8x1xf32> to vector<8x128xf32>
    %258 = arith.select %249, %257, %236 : vector<8x128xi1>, vector<8x128xf32>
    %259 = vector.shape_cast %253 : vector<8x1xf32> to vector<8x1xf32>
    %260 = vector.broadcast %259 : vector<8x1xf32> to vector<8x128xf32>
    %261 = arith.select %249, %260, %239 : vector<8x128xi1>, vector<8x128xf32>
    %262 = vector.shape_cast %255 : vector<8x1xf32> to vector<8x1xf32>
    %263 = vector.broadcast %262 : vector<8x1xf32> to vector<8x128xf32>
    %264 = arith.select %249, %263, %242 : vector<8x128xi1>, vector<8x128xf32>
    %c3_i32_57 = arith.constant 3 : i32
    %c4_i32_58 = arith.constant 4 : i32
    %265 = arith.muli %c3_i32_57, %c4_i32_58 : i32
    %266 = vector.broadcast %265 : i32 to vector<8x128xi32>
    %267 = arith.cmpi sge, %177, %266 : vector<8x128xi32>
    %c4_i32_59 = arith.constant 4 : i32
    %268 = arith.addi %265, %c4_i32_59 : i32
    %269 = vector.broadcast %268 : i32 to vector<8x128xi32>
    %270 = arith.cmpi slt, %177, %269 : vector<8x128xi32>
    %271 = arith.andi %267, %270 : vector<8x128xi1>
    %c0_60 = arith.constant 0 : index
    %272 = arith.index_cast %c3_i32_57 : i32 to index
    %273 = vector.load %arg8[%c0_60, %272] : memref<8x8xf32, #tpu.memory_space<vmem>>, vector<8x1xf32>
    %c0_61 = arith.constant 0 : index
    %274 = arith.index_cast %c3_i32_57 : i32 to index
    %275 = vector.load %arg9[%c0_61, %274] : memref<8x8xf32, #tpu.memory_space<vmem>>, vector<8x1xf32>
    %c0_62 = arith.constant 0 : index
    %276 = arith.index_cast %c3_i32_57 : i32 to index
    %277 = vector.load %arg10[%c0_62, %276] : memref<8x8xf32, #tpu.memory_space<vmem>>, vector<8x1xf32>
    %278 = vector.shape_cast %273 : vector<8x1xf32> to vector<8x1xf32>
    %279 = vector.broadcast %278 : vector<8x1xf32> to vector<8x128xf32>
    %280 = arith.select %271, %279, %258 : vector<8x128xi1>, vector<8x128xf32>
    %281 = vector.shape_cast %275 : vector<8x1xf32> to vector<8x1xf32>
    %282 = vector.broadcast %281 : vector<8x1xf32> to vector<8x128xf32>
    %283 = arith.select %271, %282, %261 : vector<8x128xi1>, vector<8x128xf32>
    %284 = vector.shape_cast %277 : vector<8x1xf32> to vector<8x1xf32>
    %285 = vector.broadcast %284 : vector<8x1xf32> to vector<8x128xf32>
    %286 = arith.select %271, %285, %264 : vector<8x128xi1>, vector<8x128xf32>
    %c4_i32_63 = arith.constant 4 : i32
    %c4_i32_64 = arith.constant 4 : i32
    %287 = arith.muli %c4_i32_63, %c4_i32_64 : i32
    %288 = vector.broadcast %287 : i32 to vector<8x128xi32>
    %289 = arith.cmpi sge, %177, %288 : vector<8x128xi32>
    %c4_i32_65 = arith.constant 4 : i32
    %290 = arith.addi %287, %c4_i32_65 : i32
    %291 = vector.broadcast %290 : i32 to vector<8x128xi32>
    %292 = arith.cmpi slt, %177, %291 : vector<8x128xi32>
    %293 = arith.andi %289, %292 : vector<8x128xi1>
    %c0_66 = arith.constant 0 : index
    %294 = arith.index_cast %c4_i32_63 : i32 to index
    %295 = vector.load %arg8[%c0_66, %294] : memref<8x8xf32, #tpu.memory_space<vmem>>, vector<8x1xf32>
    %c0_67 = arith.constant 0 : index
    %296 = arith.index_cast %c4_i32_63 : i32 to index
    %297 = vector.load %arg9[%c0_67, %296] : memref<8x8xf32, #tpu.memory_space<vmem>>, vector<8x1xf32>
    %c0_68 = arith.constant 0 : index
    %298 = arith.index_cast %c4_i32_63 : i32 to index
    %299 = vector.load %arg10[%c0_68, %298] : memref<8x8xf32, #tpu.memory_space<vmem>>, vector<8x1xf32>
    %300 = vector.shape_cast %295 : vector<8x1xf32> to vector<8x1xf32>
    %301 = vector.broadcast %300 : vector<8x1xf32> to vector<8x128xf32>
    %302 = arith.select %293, %301, %280 : vector<8x128xi1>, vector<8x128xf32>
    %303 = vector.shape_cast %297 : vector<8x1xf32> to vector<8x1xf32>
    %304 = vector.broadcast %303 : vector<8x1xf32> to vector<8x128xf32>
    %305 = arith.select %293, %304, %283 : vector<8x128xi1>, vector<8x128xf32>
    %306 = vector.shape_cast %299 : vector<8x1xf32> to vector<8x1xf32>
    %307 = vector.broadcast %306 : vector<8x1xf32> to vector<8x128xf32>
    %308 = arith.select %293, %307, %286 : vector<8x128xi1>, vector<8x128xf32>
    %c5_i32_69 = arith.constant 5 : i32
    %c4_i32_70 = arith.constant 4 : i32
    %309 = arith.muli %c5_i32_69, %c4_i32_70 : i32
    %310 = vector.broadcast %309 : i32 to vector<8x128xi32>
    %311 = arith.cmpi sge, %177, %310 : vector<8x128xi32>
    %c4_i32_71 = arith.constant 4 : i32
    %312 = arith.addi %309, %c4_i32_71 : i32
    %313 = vector.broadcast %312 : i32 to vector<8x128xi32>
    %314 = arith.cmpi slt, %177, %313 : vector<8x128xi32>
    %315 = arith.andi %311, %314 : vector<8x128xi1>
    %c0_72 = arith.constant 0 : index
    %316 = arith.index_cast %c5_i32_69 : i32 to index
    %317 = vector.load %arg8[%c0_72, %316] : memref<8x8xf32, #tpu.memory_space<vmem>>, vector<8x1xf32>
    %c0_73 = arith.constant 0 : index
    %318 = arith.index_cast %c5_i32_69 : i32 to index
    %319 = vector.load %arg9[%c0_73, %318] : memref<8x8xf32, #tpu.memory_space<vmem>>, vector<8x1xf32>
    %c0_74 = arith.constant 0 : index
    %320 = arith.index_cast %c5_i32_69 : i32 to index
    %321 = vector.load %arg10[%c0_74, %320] : memref<8x8xf32, #tpu.memory_space<vmem>>, vector<8x1xf32>
    %322 = vector.shape_cast %317 : vector<8x1xf32> to vector<8x1xf32>
    %323 = vector.broadcast %322 : vector<8x1xf32> to vector<8x128xf32>
    %324 = arith.select %315, %323, %302 : vector<8x128xi1>, vector<8x128xf32>
    %325 = vector.shape_cast %319 : vector<8x1xf32> to vector<8x1xf32>
    %326 = vector.broadcast %325 : vector<8x1xf32> to vector<8x128xf32>
    %327 = arith.select %315, %326, %305 : vector<8x128xi1>, vector<8x128xf32>
    %328 = vector.shape_cast %321 : vector<8x1xf32> to vector<8x1xf32>
    %329 = vector.broadcast %328 : vector<8x1xf32> to vector<8x128xf32>
    %330 = arith.select %315, %329, %308 : vector<8x128xi1>, vector<8x128xf32>
    %c6_i32_75 = arith.constant 6 : i32
    %c4_i32_76 = arith.constant 4 : i32
    %331 = arith.muli %c6_i32_75, %c4_i32_76 : i32
    %332 = vector.broadcast %331 : i32 to vector<8x128xi32>
    %333 = arith.cmpi sge, %177, %332 : vector<8x128xi32>
    %c4_i32_77 = arith.constant 4 : i32
    %334 = arith.addi %331, %c4_i32_77 : i32
    %335 = vector.broadcast %334 : i32 to vector<8x128xi32>
    %336 = arith.cmpi slt, %177, %335 : vector<8x128xi32>
    %337 = arith.andi %333, %336 : vector<8x128xi1>
    %c0_78 = arith.constant 0 : index
    %338 = arith.index_cast %c6_i32_75 : i32 to index
    %339 = vector.load %arg8[%c0_78, %338] : memref<8x8xf32, #tpu.memory_space<vmem>>, vector<8x1xf32>
    %c0_79 = arith.constant 0 : index
    %340 = arith.index_cast %c6_i32_75 : i32 to index
    %341 = vector.load %arg9[%c0_79, %340] : memref<8x8xf32, #tpu.memory_space<vmem>>, vector<8x1xf32>
    %c0_80 = arith.constant 0 : index
    %342 = arith.index_cast %c6_i32_75 : i32 to index
    %343 = vector.load %arg10[%c0_80, %342] : memref<8x8xf32, #tpu.memory_space<vmem>>, vector<8x1xf32>
    %344 = vector.shape_cast %339 : vector<8x1xf32> to vector<8x1xf32>
    %345 = vector.broadcast %344 : vector<8x1xf32> to vector<8x128xf32>
    %346 = arith.select %337, %345, %324 : vector<8x128xi1>, vector<8x128xf32>
    %347 = vector.shape_cast %341 : vector<8x1xf32> to vector<8x1xf32>
    %348 = vector.broadcast %347 : vector<8x1xf32> to vector<8x128xf32>
    %349 = arith.select %337, %348, %327 : vector<8x128xi1>, vector<8x128xf32>
    %350 = vector.shape_cast %343 : vector<8x1xf32> to vector<8x1xf32>
    %351 = vector.broadcast %350 : vector<8x1xf32> to vector<8x128xf32>
    %352 = arith.select %337, %351, %330 : vector<8x128xi1>, vector<8x128xf32>
    %c7_i32_81 = arith.constant 7 : i32
    %c4_i32_82 = arith.constant 4 : i32
    %353 = arith.muli %c7_i32_81, %c4_i32_82 : i32
    %354 = vector.broadcast %353 : i32 to vector<8x128xi32>
    %355 = arith.cmpi sge, %177, %354 : vector<8x128xi32>
    %c4_i32_83 = arith.constant 4 : i32
    %356 = arith.addi %353, %c4_i32_83 : i32
    %357 = vector.broadcast %356 : i32 to vector<8x128xi32>
    %358 = arith.cmpi slt, %177, %357 : vector<8x128xi32>
    %359 = arith.andi %355, %358 : vector<8x128xi1>
    %c0_84 = arith.constant 0 : index
    %360 = arith.index_cast %c7_i32_81 : i32 to index
    %361 = vector.load %arg8[%c0_84, %360] : memref<8x8xf32, #tpu.memory_space<vmem>>, vector<8x1xf32>
    %c0_85 = arith.constant 0 : index
    %362 = arith.index_cast %c7_i32_81 : i32 to index
    %363 = vector.load %arg9[%c0_85, %362] : memref<8x8xf32, #tpu.memory_space<vmem>>, vector<8x1xf32>
    %c0_86 = arith.constant 0 : index
    %364 = arith.index_cast %c7_i32_81 : i32 to index
    %365 = vector.load %arg10[%c0_86, %364] : memref<8x8xf32, #tpu.memory_space<vmem>>, vector<8x1xf32>
    %366 = vector.shape_cast %361 : vector<8x1xf32> to vector<8x1xf32>
    %367 = vector.broadcast %366 : vector<8x1xf32> to vector<8x128xf32>
    %368 = arith.select %359, %367, %346 : vector<8x128xi1>, vector<8x128xf32>
    %369 = vector.shape_cast %363 : vector<8x1xf32> to vector<8x1xf32>
    %370 = vector.broadcast %369 : vector<8x1xf32> to vector<8x128xf32>
    %371 = arith.select %359, %370, %349 : vector<8x128xi1>, vector<8x128xf32>
    %372 = vector.shape_cast %365 : vector<8x1xf32> to vector<8x1xf32>
    %373 = vector.broadcast %372 : vector<8x1xf32> to vector<8x128xf32>
    %374 = arith.select %359, %373, %352 : vector<8x128xi1>, vector<8x128xf32>
    %c8_i32_87 = arith.constant 8 : i32
    %c0_88 = arith.constant 0 : index
    %c0_89 = arith.constant 0 : index
    %375 = vector.load %arg1[%c0_88, %c0_89] : memref<8x1xf32, #tpu.memory_space<vmem>>, vector<8x1xf32>
    %c0_90 = arith.constant 0 : index
    %c0_91 = arith.constant 0 : index
    %c0_92 = arith.constant 0 : index
    %376 = vector.load %arg6[%c0_90, %c0_91, %c0_92] : memref<4x8x128xf32, #tpu.memory_space<vmem>>, vector<1x8x128xf32>
    %377 = vector.shape_cast %376 : vector<1x8x128xf32> to vector<8x128xf32>
    %378 = vector.shape_cast %174 : vector<8x128xf32> to vector<1x8x128xf32>
    tpu.vector_store %arg6[%c0_90, %c0_91, %c0_92], %378 {strides = array<i32>} : memref<4x8x128xf32, #tpu.memory_space<vmem>>, vector<1x8x128xf32>,
    %c1 = arith.constant 1 : index
    %c0_93 = arith.constant 0 : index
    %c0_94 = arith.constant 0 : index
    %379 = vector.load %arg6[%c1, %c0_93, %c0_94] : memref<4x8x128xf32, #tpu.memory_space<vmem>>, vector<1x8x128xf32>
    %380 = vector.shape_cast %379 : vector<1x8x128xf32> to vector<8x128xf32>
    %381 = vector.shape_cast %374 : vector<8x128xf32> to vector<1x8x128xf32>
    tpu.vector_store %arg6[%c1, %c0_93, %c0_94], %381 {strides = array<i32>} : memref<4x8x128xf32, #tpu.memory_space<vmem>>, vector<1x8x128xf32>,
    %382 = vector.broadcast %375 : vector<8x1xf32> to vector<8x128xf32>
    %383 = arith.mulf %368, %382 : vector<8x128xf32>
    %c2 = arith.constant 2 : index
    %c0_95 = arith.constant 0 : index
    %c0_96 = arith.constant 0 : index
    %384 = vector.load %arg6[%c2, %c0_95, %c0_96] : memref<4x8x128xf32, #tpu.memory_space<vmem>>, vector<1x8x128xf32>
    %385 = vector.shape_cast %384 : vector<1x8x128xf32> to vector<8x128xf32>
    %386 = vector.shape_cast %383 : vector<8x128xf32> to vector<1x8x128xf32>
    tpu.vector_store %arg6[%c2, %c0_95, %c0_96], %386 {strides = array<i32>} : memref<4x8x128xf32, #tpu.memory_space<vmem>>, vector<1x8x128xf32>,
    %387 = vector.broadcast %375 : vector<8x1xf32> to vector<8x128xf32>
    %388 = arith.mulf %371, %387 : vector<8x128xf32>
    %c3 = arith.constant 3 : index
    %c0_97 = arith.constant 0 : index
    %c0_98 = arith.constant 0 : index
    %389 = vector.load %arg6[%c3, %c0_97, %c0_98] : memref<4x8x128xf32, #tpu.memory_space<vmem>>, vector<1x8x128xf32>
    %390 = vector.shape_cast %389 : vector<1x8x128xf32> to vector<8x128xf32>
    %391 = vector.shape_cast %388 : vector<8x128xf32> to vector<1x8x128xf32>
    tpu.vector_store %arg6[%c3, %c0_97, %c0_98], %391 {strides = array<i32>} : memref<4x8x128xf32, #tpu.memory_space<vmem>>, vector<1x8x128xf32>,
    %c0_99 = arith.constant 0 : index
    %c0_100 = arith.constant 0 : index
    %392 = vector.load %arg7[%c0_99, %c0_100] : memref<8x128xi32, #tpu.memory_space<vmem>>, vector<8x128xi32>
    tpu.vector_store %arg7[%c0_99, %c0_100], %177 {strides = array<i32>} : memref<8x128xi32, #tpu.memory_space<vmem>>, vector<8x128xi32>,
    return
  }
  func.func @transform_0(%arg0: i32) -> (i32, i32) {
    %c0_i32 = arith.constant 0 : i32
    %c0_i32_0 = arith.constant 0 : i32
    return %arg0, %c0_i32 : i32, i32
  }
  func.func @transform_1(%arg0: i32) -> (i32, i32) {
    %c0_i32 = arith.constant 0 : i32
    %c0_i32_0 = arith.constant 0 : i32
    return %arg0, %c0_i32 : i32, i32
  }
  func.func @transform_2(%arg0: i32) -> (i32, i32) {
    %c0_i32 = arith.constant 0 : i32
    %c0_i32_0 = arith.constant 0 : i32
    return %arg0, %c0_i32 : i32, i32
  }
  func.func @transform_3(%arg0: i32) -> (i32, i32) {
    %c0_i32 = arith.constant 0 : i32
    %c0_i32_0 = arith.constant 0 : i32
    return %arg0, %c0_i32 : i32, i32
  }
  func.func @transform_4(%arg0: i32) -> (i32, i32) {
    %c0_i32 = arith.constant 0 : i32
    %c0_i32_0 = arith.constant 0 : i32
    return %arg0, %c0_i32 : i32, i32
  }
  func.func @transform_5(%arg0: i32) -> (i32, i32, i32) {
    %c0_i32 = arith.constant 0 : i32
    %c0_i32_0 = arith.constant 0 : i32
    %c0_i32_1 = arith.constant 0 : i32
    return %c0_i32, %arg0, %c0_i32_0 : i32, i32, i32
  }
  func.func @transform_6(%arg0: i32) -> (i32, i32) {
    %c0_i32 = arith.constant 0 : i32
    %c0_i32_0 = arith.constant 0 : i32
    return %arg0, %c0_i32 : i32, i32
  }
}

</mosaic_0001>

<llo_original>
// kernel: tpu_custom_call.1
$region0: #{tpu_custom_call.1}
  #allocation0 [shape = 'u32[]', space=smem, size = 0x4, offset = 0x4, fixed_abs, tag = 'smem constant byte address 0x4 - core index']
  #allocation1 [shape = 'u32[144,128]{1,0:T(1,128)}', space=vmem, size = 0x12000, scoped, tag = 'internal scratch']
  #allocation2 [shape = 'f32[8,8]{1,0:T(8,128)}', space=vmem, size = 0x1000, scoped, tag = 'scratch operand']
  #allocation3 [shape = 'f32[8,8]{1,0:T(8,128)}', space=vmem, size = 0x1000, scoped, tag = 'scratch operand']
  #allocation4 [shape = 'f32[8,8]{1,0:T(8,128)}', space=vmem, size = 0x1000, scoped, tag = 'scratch operand']
  %s0 = inlined_call_operand.vmem [shape: f32[2,1], index: 0, kind: input, shape index: {}]
  %s1 = inlined_call_operand.vmem [shape: f32[2,32], index: 1, kind: input, shape index: {}]
  %s2 = inlined_call_operand.vmem [shape: f32[2,8], index: 2, kind: input, shape index: {}]
  %s3 = inlined_call_operand.vmem [shape: f32[2,8], index: 3, kind: input, shape index: {}]
  %s4 = inlined_call_operand.vmem [shape: f32[2,8], index: 4, kind: input, shape index: {}]
  %s5 = inlined_call_operand.hbm [shape: f32[4,8,128], index: 5, kind: output, shape index: {0}]
  %s6 = inlined_call_operand.hbm [shape: s32[8,128], index: 6, kind: output, shape index: {1}]
  %7 = xla_tuple %s5, %s6
  %s8 = sld [smem:[#allocation0]]
  $region38: #{tpu_custom_call.1} parent=0
    _
  %s10 = ssub.s32 1, %s8
  %s11 = scalar_select 0, %s10, %s8
  $region1: #{tpu_custom_call.1} parent=0
    #allocation5 [shape = 'u8[16384]{0}', space=vmem, size = 0x4000, scoped, tag = 'output window, operand 0, single buffered']
    #allocation6 [shape = 's32[1]{0}', space=sflag, size = 0x4, scoped, tag = 'scoped memory for tpu_custom_call.1']
    #allocation7 [shape = 'u8[4096]{0}', space=vmem, size = 0x1000, scoped, tag = 'output window, operand 1, single buffered']
    #allocation8 [shape = 's32[1]{0}', space=sflag, size = 0x4, scoped, tag = 'scoped memory for tpu_custom_call.1']
    %12 = vsyncpa [#allocation6], 0
    %13 = vsyncpa [#allocation8], 0
    // Predicated region
    $region2: #{tpu_custom_call.1} parent=1 // pred_check
      _
    $region3: #{tpu_custom_call.1} parent=1 // pred_check_branch
      %15 = sbr.rel (0) target = $region5
    $region4: #{tpu_custom_call.1} parent=1 // pred_region
      _
    $region5: #{tpu_custom_call.1} parent=1 // pred_fallthru
      _
    // Predicated region
    $region6: #{tpu_custom_call.1} parent=1 // pred_check
      _
    $region7: #{tpu_custom_call.1} parent=1 // pred_check_branch
      %17 = sbr.rel (0) target = $region9
    $region8: #{tpu_custom_call.1} parent=1 // pred_region
      _
    $region9: #{tpu_custom_call.1} parent=1 // pred_fallthru
      _
    // Predicated region
    $region10: #{tpu_custom_call.1} parent=1 // pred_check
      _
    $region11: #{tpu_custom_call.1} parent=1 // pred_check_branch
      %19 = sbr.rel (0) target = $region13
    $region12: #{tpu_custom_call.1} parent=1 // pred_region
      _
    $region13: #{tpu_custom_call.1} parent=1 // pred_fallthru
      _
    // Predicated region
    $region14: #{tpu_custom_call.1} parent=1 // pred_check
      _
    $region15: #{tpu_custom_call.1} parent=1 // pred_check_branch
      %21 = sbr.rel (0) target = $region17
    $region16: #{tpu_custom_call.1} parent=1 // pred_region
      _
    $region17: #{tpu_custom_call.1} parent=1 // pred_fallthru
      _
    // Predicated region
    $region18: #{tpu_custom_call.1} parent=1 // pred_check
      _
    $region19: #{tpu_custom_call.1} parent=1 // pred_check_branch
      %23 = sbr.rel (0) target = $region21
    $region20: #{tpu_custom_call.1} parent=1 // pred_region
      _
    $region21: #{tpu_custom_call.1} parent=1 // pred_fallthru
      _
    %v24 = vld [vmem:[%s1] sm:$0xff]
    %v25 = vxor.u32 %v24, 2147483648
    %v26 = vmul.f32 %v25, 1.442695
    %v27 = vpow.pop %v26
    %v28 = vadd.f32 %v27, 1.0
    %v29 = vrcp.pop %v28
    %v30 = vmul.f32 1.0, %v29
    %v31 = vlaneseq
    %v32 = vand.u32 %v31, 127
    %vm33 = vcmp.eq.s32.totalorder %v32, 4294967295
    %v34 = vsel %vm33, -inf, %v30
    %vm35 = vcmask 261120
    %v36 = vsel %vm35, %v34, -inf
    %37 = vmax.xlane.f32.xlu0 %v36
    %v38 = vpop.xlane.xlu0 %37
    %vm39 = vcmp.eq.f32.partialorder %v34, %v38
    %v40 = vsel %vm39, %v32, 32
    %v41 = vsel %vm35, %v40, 2147483647
    %v42 = vand.u32 %v41, 65535
    %v43 = vshra.s32 %v41, 16
    %v44 = vcvt.s32.f32 %v42
    %v45 = vcvt.s32.f32 %v43
    %46 = vmin.xlane.f32.xlu0 %v45
    %v47 = vpop.xlane.xlu0 %46
    %vm48 = vcmp.eq.f32.partialorder %v45, %v47
    %v49 = vsel %vm48, %v44, inf
    %50 = vmin.xlane.f32.xlu0 %v49
    %v51 = vpop.xlane.xlu0 %50
    %v52 = vcvt.f32.s32 %v51
    %v53 = vcvt.f32.s32 %v47
    %v54 = vshll.u32 %v53, 16
    %v55 = vadd.s32 %v54, %v52
    %vm56 = vcmp.eq.s32.totalorder %v32, 0
    %v57 = vsel %vm56, %v38, 0.0
    %v58 = vsel %vm56, %v55, 0
    %vm59 = vcmp.eq.s32.totalorder %v32, %v55
    %v60 = vsel %vm59, -inf, %v34
    %v61 = vsel %vm35, %v60, -inf
    %62 = vmax.xlane.f32.xlu0 %v61
    %v63 = vpop.xlane.xlu0 %62
    %vm64 = vcmp.eq.f32.partialorder %v60, %v63
    %v65 = vsel %vm64, %v32, 32
    %v66 = vsel %vm35, %v65, 2147483647
    %v67 = vand.u32 %v66, 65535
    %v68 = vshra.s32 %v66, 16
    %v69 = vcvt.s32.f32 %v67
    %v70 = vcvt.s32.f32 %v68
    %71 = vmin.xlane.f32.xlu0 %v70
    %v72 = vpop.xlane.xlu0 %71
    %vm73 = vcmp.eq.f32.partialorder %v70, %v72
    %v74 = vsel %vm73, %v69, inf
    %75 = vmin.xlane.f32.xlu0 %v74
    %v76 = vpop.xlane.xlu0 %75
    %v77 = vcvt.f32.s32 %v76
    %v78 = vcvt.f32.s32 %v72
    %v79 = vshll.u32 %v78, 16
    %v80 = vadd.s32 %v79, %v77
    %vm81 = vcmp.eq.s32.totalorder %v32, 1
    %v82 = vsel %vm81, %v63, %v57
    %v83 = vsel %vm81, %v80, %v58
    %vm84 = vcmp.eq.s32.totalorder %v32, %v80
    %v85 = vsel %vm84, -inf, %v60
    %v86 = vsel %vm35, %v85, -inf
    %87 = vmax.xlane.f32.xlu0 %v86
    %v88 = vpop.xlane.xlu0 %87
    %vm89 = vcmp.eq.f32.partialorder %v85, %v88
    %v90 = vsel %vm89, %v32, 32
    %v91 = vsel %vm35, %v90, 2147483647
    %v92 = vand.u32 %v91, 65535
    %v93 = vshra.s32 %v91, 16
    %v94 = vcvt.s32.f32 %v92
    %v95 = vcvt.s32.f32 %v93
    %96 = vmin.xlane.f32.xlu0 %v95
    %v97 = vpop.xlane.xlu0 %96
    %vm98 = vcmp.eq.f32.partialorder %v95, %v97
    %v99 = vsel %vm98, %v94, inf
    %100 = vmin.xlane.f32.xlu0 %v99
    %v101 = vpop.xlane.xlu0 %100
    %v102 = vcvt.f32.s32 %v101
    %v103 = vcvt.f32.s32 %v97
    %v104 = vshll.u32 %v103, 16
    %v105 = vadd.s32 %v104, %v102
    %vm106 = vcmp.eq.s32.totalorder %v32, 2
    %v107 = vsel %vm106, %v88, %v82
    %v108 = vsel %vm106, %v105, %v83
    %vm109 = vcmp.eq.s32.totalorder %v32, %v105
    %v110 = vsel %vm109, -inf, %v85
    %v111 = vsel %vm35, %v110, -inf
    %112 = vmax.xlane.f32.xlu0 %v111
    %v113 = vpop.xlane.xlu0 %112
    %vm114 = vcmp.eq.f32.partialorder %v110, %v113
    %v115 = vsel %vm114, %v32, 32
    %v116 = vsel %vm35, %v115, 2147483647
    %v117 = vand.u32 %v116, 65535
    %v118 = vshra.s32 %v116, 16
    %v119 = vcvt.s32.f32 %v117
    %v120 = vcvt.s32.f32 %v118
    %121 = vmin.xlane.f32.xlu0 %v120
    %v122 = vpop.xlane.xlu0 %121
    %vm123 = vcmp.eq.f32.partialorder %v120, %v122
    %v124 = vsel %vm123, %v119, inf
    %125 = vmin.xlane.f32.xlu0 %v124
    %v126 = vpop.xlane.xlu0 %125
    %v127 = vcvt.f32.s32 %v126
    %v128 = vcvt.f32.s32 %v122
    %v129 = vshll.u32 %v128, 16
    %v130 = vadd.s32 %v129, %v127
    %vm131 = vcmp.eq.s32.totalorder %v32, 3
    %v132 = vsel %vm131, %v113, %v107
    %v133 = vsel %vm131, %v130, %v108
    %vm134 = vcmp.eq.s32.totalorder %v32, %v130
    %v135 = vsel %vm134, -inf, %v110
    %v136 = vsel %vm35, %v135, -inf
    %137 = vmax.xlane.f32.xlu0 %v136
    %v138 = vpop.xlane.xlu0 %137
    %vm139 = vcmp.eq.f32.partialorder %v135, %v138
    %v140 = vsel %vm139, %v32, 32
    %v141 = vsel %vm35, %v140, 2147483647
    %v142 = vand.u32 %v141, 65535
    %v143 = vshra.s32 %v141, 16
    %v144 = vcvt.s32.f32 %v142
    %v145 = vcvt.s32.f32 %v143
    %146 = vmin.xlane.f32.xlu0 %v145
    %v147 = vpop.xlane.xlu0 %146
    %vm148 = vcmp.eq.f32.partialorder %v145, %v147
    %v149 = vsel %vm148, %v144, inf
    %150 = vmin.xlane.f32.xlu0 %v149
    %v151 = vpop.xlane.xlu0 %150
    %v152 = vcvt.f32.s32 %v151
    %v153 = vcvt.f32.s32 %v147
    %v154 = vshll.u32 %v153, 16
    %v155 = vadd.s32 %v154, %v152
    %vm156 = vcmp.eq.s32.totalorder %v32, 4
    %v157 = vsel %vm156, %v138, %v132
    %v158 = vsel %vm156, %v155, %v133
    %vm159 = vcmp.eq.s32.totalorder %v32, %v155
    %v160 = vsel %vm159, -inf, %v135
    %v161 = vsel %vm35, %v160, -inf
    %162 = vmax.xlane.f32.xlu0 %v161
    %v163 = vpop.xlane.xlu0 %162
    %vm164 = vcmp.eq.f32.partialorder %v160, %v163
    %v165 = vsel %vm164, %v32, 32
    %v166 = vsel %vm35, %v165, 2147483647
    %v167 = vand.u32 %v166, 65535
    %v168 = vshra.s32 %v166, 16
    %v169 = vcvt.s32.f32 %v167
    %v170 = vcvt.s32.f32 %v168
    %171 = vmin.xlane.f32.xlu0 %v170
    %v172 = vpop.xlane.xlu0 %171
    %vm173 = vcmp.eq.f32.partialorder %v170, %v172
    %v174 = vsel %vm173, %v169, inf
    %175 = vmin.xlane.f32.xlu0 %v174
    %v176 = vpop.xlane.xlu0 %175
    %v177 = vcvt.f32.s32 %v176
    %v178 = vcvt.f32.s32 %v172
    %v179 = vshll.u32 %v178, 16
    %v180 = vadd.s32 %v179, %v177
    %vm181 = vcmp.eq.s32.totalorder %v32, 5
    %v182 = vsel %vm181, %v163, %v157
    %v183 = vsel %vm181, %v180, %v158
    %vm184 = vcmp.eq.s32.totalorder %v32, %v180
    %v185 = vsel %vm184, -inf, %v160
    %v186 = vsel %vm35, %v185, -inf
    %187 = vmax.xlane.f32.xlu0 %v186
    %v188 = vpop.xlane.xlu0 %187
    %vm189 = vcmp.eq.f32.partialorder %v185, %v188
    %v190 = vsel %vm189, %v32, 32
    %v191 = vsel %vm35, %v190, 2147483647
    %v192 = vand.u32 %v191, 65535
    %v193 = vshra.s32 %v191, 16
    %v194 = vcvt.s32.f32 %v192
    %v195 = vcvt.s32.f32 %v193
    %196 = vmin.xlane.f32.xlu0 %v195
    %v197 = vpop.xlane.xlu0 %196
    %vm198 = vcmp.eq.f32.partialorder %v195, %v197
    %v199 = vsel %vm198, %v194, inf
    %200 = vmin.xlane.f32.xlu0 %v199
    %v201 = vpop.xlane.xlu0 %200
    %v202 = vcvt.f32.s32 %v201
    %v203 = vcvt.f32.s32 %v197
    %v204 = vshll.u32 %v203, 16
    %v205 = vadd.s32 %v204, %v202
    %vm206 = vcmp.eq.s32.totalorder %v32, 6
    %v207 = vsel %vm206, %v188, %v182
    %v208 = vsel %vm206, %v205, %v183
    %vm209 = vcmp.eq.s32.totalorder %v32, %v205
    %v210 = vsel %vm209, -inf, %v185
    %v211 = vsel %vm35, %v210, -inf
    %212 = vmax.xlane.f32.xlu0 %v211
    %v213 = vpop.xlane.xlu0 %212
    %vm214 = vcmp.eq.f32.partialorder %v210, %v213
    %v215 = vsel %vm214, %v32, 32
    %v216 = vsel %vm35, %v215, 2147483647
    %v217 = vand.u32 %v216, 65535
    %v218 = vshra.s32 %v216, 16
    %v219 = vcvt.s32.f32 %v217
    %v220 = vcvt.s32.f32 %v218
    %221 = vmin.xlane.f32.xlu0 %v220
    %v222 = vpop.xlane.xlu0 %221
    %vm223 = vcmp.eq.f32.partialorder %v220, %v222
    %v224 = vsel %vm223, %v219, inf
    %225 = vmin.xlane.f32.xlu0 %v224
    %v226 = vpop.xlane.xlu0 %225
    %v227 = vcvt.f32.s32 %v226
    %v228 = vcvt.f32.s32 %v222
    %v229 = vshll.u32 %v228, 16
    %v230 = vadd.s32 %v229, %v227
    %vm231 = vcmp.eq.s32.totalorder %v32, 7
    %v232 = vsel %vm231, %v213, %v207
    %v233 = vsel %vm231, %v230, %v208
    %v234 = vld [vmem:[%s2] sm:$0xff]
    %v235 = vld [vmem:[%s3] sm:$0xff]
    %v236 = vmul.f32 %v235, 0.5
    %v237 = vsub.f32 %v234, %v236
    %v238 = vmax.f32 %v237, 0.0
    %v239 = vmin.f32 %v238, 1.0
    %vm240 = vcmask 64512
    %241 = vst.msk [vmem:[#allocation2] sm:$0xff] %vm240, %v239
    %v242 = vadd.f32 %v234, %v236
    %v243 = vmax.f32 %v242, 0.0
    %v244 = vmin.f32 %v243, 1.0
    %245 = vst.msk [vmem:[#allocation3] sm:$0xff] %vm240, %v244
    %v246 = vld [vmem:[%s4] sm:$0xff]
    %247 = vst.msk [vmem:[#allocation4] sm:$0xff] %vm240, %v246
    %vm248 = vcmp.ge.s32.totalorder %v233, 0
    %vm249 = vcmp.lt.s32.totalorder %v233, 4
    %vm250 = vmand %vm248, %vm249
    %v251 = vld [vmem:[#allocation2] sm:$0xff]
    %v252 = vld [vmem:[#allocation3] sm:$0xff]
    %v253 = vld [vmem:[#allocation4] sm:$0xff]
    %255 = vset.pattern.permute.xlu0 0
    %256 = vperm.xlu0 %255, %v251
    %v257 = vpop.permute.xlu0 %256
    %v259 = vsel %vm250, %v257, 0.0
    %261 = vset.pattern.permute.xlu0 0
    %262 = vperm.xlu0 %261, %v252
    %v263 = vpop.permute.xlu0 %262
    %v265 = vsel %vm250, %v263, 0.0
    %267 = vset.pattern.permute.xlu0 0
    %268 = vperm.xlu0 %267, %v253
    %v269 = vpop.permute.xlu0 %268
    %v271 = vsel %vm250, %v269, 0.0
    %vm272 = vcmp.ge.s32.totalorder %v233, 4
    %vm273 = vcmp.lt.s32.totalorder %v233, 8
    %vm274 = vmand %vm272, %vm273
    %275 = vset.pattern.permute.xlu0 1
    %276 = vperm.xlu0 %275, %v251
    %v277 = vpop.permute.xlu0 %276
    %v279 = vsel %vm274, %v277, %v259
    %280 = vset.pattern.permute.xlu0 1
    %281 = vperm.xlu0 %280, %v252
    %v282 = vpop.permute.xlu0 %281
    %v284 = vsel %vm274, %v282, %v265
    %285 = vset.pattern.permute.xlu0 1
    %286 = vperm.xlu0 %285, %v253
    %v287 = vpop.permute.xlu0 %286
    %v289 = vsel %vm274, %v287, %v271
    %vm290 = vcmp.ge.s32.totalorder %v233, 8
    %vm291 = vcmp.lt.s32.totalorder %v233, 12
    %vm292 = vmand %vm290, %vm291
    %293 = vset.pattern.permute.xlu0 2
    %294 = vperm.xlu0 %293, %v251
    %v295 = vpop.permute.xlu0 %294
    %v297 = vsel %vm292, %v295, %v279
    %298 = vset.pattern.permute.xlu0 2
    %299 = vperm.xlu0 %298, %v252
    %v300 = vpop.permute.xlu0 %299
    %v302 = vsel %vm292, %v300, %v284
    %303 = vset.pattern.permute.xlu0 2
    %304 = vperm.xlu0 %303, %v253
    %v305 = vpop.permute.xlu0 %304
    %v307 = vsel %vm292, %v305, %v289
    %vm308 = vcmp.ge.s32.totalorder %v233, 12
    %vm309 = vcmp.lt.s32.totalorder %v233, 16
    %vm310 = vmand %vm308, %vm309
    %311 = vset.pattern.permute.xlu0 3
    %312 = vperm.xlu0 %311, %v251
    %v313 = vpop.permute.xlu0 %312
    %v315 = vsel %vm310, %v313, %v297
    %316 = vset.pattern.permute.xlu0 3
    %317 = vperm.xlu0 %316, %v252
    %v318 = vpop.permute.xlu0 %317
    %v320 = vsel %vm310, %v318, %v302
    %321 = vset.pattern.permute.xlu0 3
    %322 = vperm.xlu0 %321, %v253
    %v323 = vpop.permute.xlu0 %322
    %v325 = vsel %vm310, %v323, %v307
    %vm326 = vcmp.ge.s32.totalorder %v233, 16
    %vm327 = vcmp.lt.s32.totalorder %v233, 20
    %vm328 = vmand %vm326, %vm327
    %329 = vset.pattern.permute.xlu0 4
    %330 = vperm.xlu0 %329, %v251
    %v331 = vpop.permute.xlu0 %330
    %v333 = vsel %vm328, %v331, %v315
    %334 = vset.pattern.permute.xlu0 4
    %335 = vperm.xlu0 %334, %v252
    %v336 = vpop.permute.xlu0 %335
    %v338 = vsel %vm328, %v336, %v320
    %339 = vset.pattern.permute.xlu0 4
    %340 = vperm.xlu0 %339, %v253
    %v341 = vpop.permute.xlu0 %340
    %v343 = vsel %vm328, %v341, %v325
    %vm344 = vcmp.ge.s32.totalorder %v233, 20
    %vm345 = vcmp.lt.s32.totalorder %v233, 24
    %vm346 = vmand %vm344, %vm345
    %347 = vset.pattern.permute.xlu0 5
    %348 = vperm.xlu0 %347, %v251
    %v349 = vpop.permute.xlu0 %348
    %v351 = vsel %vm346, %v349, %v333
    %352 = vset.pattern.permute.xlu0 5
    %353 = vperm.xlu0 %352, %v252
    %v354 = vpop.permute.xlu0 %353
    %v356 = vsel %vm346, %v354, %v338
    %357 = vset.pattern.permute.xlu0 5
    %358 = vperm.xlu0 %357, %v253
    %v359 = vpop.permute.xlu0 %358
    %v361 = vsel %vm346, %v359, %v343
    %vm362 = vcmp.ge.s32.totalorder %v233, 24
    %vm363 = vcmp.lt.s32.totalorder %v233, 28
    %vm364 = vmand %vm362, %vm363
    %365 = vset.pattern.permute.xlu0 6
    %366 = vperm.xlu0 %365, %v251
    %v367 = vpop.permute.xlu0 %366
    %v369 = vsel %vm364, %v367, %v351
    %370 = vset.pattern.permute.xlu0 6
    %371 = vperm.xlu0 %370, %v252
    %v372 = vpop.permute.xlu0 %371
    %v374 = vsel %vm364, %v372, %v356
    %375 = vset.pattern.permute.xlu0 6
    %376 = vperm.xlu0 %375, %v253
    %v377 = vpop.permute.xlu0 %376
    %v379 = vsel %vm364, %v377, %v361
    %vm380 = vcmp.ge.s32.totalorder %v233, 28
    %vm381 = vcmp.lt.s32.totalorder %v233, 32
    %vm382 = vmand %vm380, %vm381
    %383 = vset.pattern.permute.xlu0 7
    %384 = vperm.xlu0 %383, %v251
    %v385 = vpop.permute.xlu0 %384
    %v387 = vsel %vm382, %v385, %v369
    %388 = vset.pattern.permute.xlu0 7
    %389 = vperm.xlu0 %388, %v252
    %v390 = vpop.permute.xlu0 %389
    %v392 = vsel %vm382, %v390, %v374
    %393 = vset.pattern.permute.xlu0 7
    %394 = vperm.xlu0 %393, %v253
    %v395 = vpop.permute.xlu0 %394
    %v397 = vsel %vm382, %v395, %v379
    %v398 = vld [vmem:[%s0] sm:$0xff]
    %399 = vst [vmem:[#allocation5] sm:$0xff] %v232
    %s400 = scalar_lea.vmem [#allocation5], 8
    %401 = vst [vmem:[%s400] sm:$0xff] %v397
    %403 = vset.pattern.permute.xlu0 0
    %404 = vperm.xlu0 %403, %v398
    %v405 = vpop.permute.xlu0 %404
    %v407 = vmul.f32 %v387, %v405
    %s408 = scalar_lea.vmem [#allocation5], 16
    %409 = vst [vmem:[%s408] sm:$0xff] %v407
    %v410 = vmul.f32 %v392, %v405
    %s411 = scalar_lea.vmem [#allocation5], 24
    %412 = vst [vmem:[%s411] sm:$0xff] %v410
    %413 = vst [vmem:[#allocation7] sm:$0xff] %v233
    // Predicated region
    $region22: #{tpu_custom_call.1} parent=1 // pred_check
      _
    $region23: #{tpu_custom_call.1} parent=1 // pred_check_branch
      %415 = sbr.rel (0) target = $region25
    $region24: #{tpu_custom_call.1} parent=1 // pred_region
      %s417 = ssub.s32 512, 512
      %418 = vsyncadd [#allocation6], %s417
      %s419 = sshll.u32 [#allocation5], 4
      %s420 = int_to_ptr.vmem [resolvable:$true] %s419
      %425 = dma.vmem_to_hbm [thread:$0]  %s420, 512, %s5, [#allocation6], 128, 128, 8
    $region25: #{tpu_custom_call.1} parent=1 // pred_fallthru
      _
    // Predicated region
    $region26: #{tpu_custom_call.1} parent=1 // pred_check
      _
    $region27: #{tpu_custom_call.1} parent=1 // pred_check_branch
      %427 = sbr.rel (0) target = $region29
    $region28: #{tpu_custom_call.1} parent=1 // pred_region
      %s429 = ssub.s32 128, 128
      %430 = vsyncadd [#allocation8], %s429
      %s432 = sshll.u32 [#allocation7], 4
      %s433 = int_to_ptr.vmem [resolvable:$true] %s432
      %435 = dma.vmem_to_hbm [thread:$0]  %s433, 128, %s6, [#allocation8]
    $region29: #{tpu_custom_call.1} parent=1 // pred_fallthru
      _
    // Predicated region
    $region30: #{tpu_custom_call.1} parent=1 // pred_check
      _
    $region31: #{tpu_custom_call.1} parent=1 // pred_check_branch
      %437 = sbr.rel (0) target = $region33
    $region32: #{tpu_custom_call.1} parent=1 // pred_region
      %438 = dma.done [#allocation6], 512
    $region33: #{tpu_custom_call.1} parent=1 // pred_fallthru
      _
    // Predicated region
    $region34: #{tpu_custom_call.1} parent=1 // pred_check
      _
    $region35: #{tpu_custom_call.1} parent=1 // pred_check_branch
      %440 = sbr.rel (0) target = $region37
    $region36: #{tpu_custom_call.1} parent=1 // pred_region
      %441 = dma.done [#allocation8], 128
    $region37: #{tpu_custom_call.1} parent=1 // pred_fallthru
      _
    %442 = vsyncpa [#allocation6], 1
    %443 = vsyncpa [#allocation8], 1

</llo_original>
